<compile_context>
chip_gen: v6e
topology: v6e:2x2x1
jax: 0.10.0
libtpu: 0.0.40
codegen_flags: <defaults>
</compile_context>

<pallas_src>
import math
import functools

import jax
import jax.numpy as jnp
from jax import lax
from jax.experimental import pallas as pl
from jax.experimental.pallas import tpu as pltpu


def _qkv_attention_kernel(q_ref, k_ref, v_ref, o_ref, *, scale_sq):
    # Refs are [1, Bh, C, T] blocks: one batch element, Bh heads at a time.
    q = q_ref[0]          # [Bh, C, T], native dtype (bf16 feeds the MXU directly)
    k = k_ref[0]          # [Bh, C, T]
    v = v_ref[0]          # [Bh, C, T]

    # logits[b, t, s] = sum_c q[b, c, t] * k[b, c, s]      ('bct,bcs->bts')
    # Batched dot_general in the stored layout: no in-kernel transposes.
    w = lax.dot_general(
        q, k,
        dimension_numbers=(((1,), (1,)), ((0,), (0,))),
        preferred_element_type=jnp.float32,
    )                                                      # [Bh, T, T] f32
    # Single fused scaling (replaces the separate q*scale and k*scale VPU muls;
    # safe because accumulation is f32, so the fp16 split-scaling trick is moot).
    w = w * scale_sq

    # Numerically-stable softmax over keys, kept in f32
    # (matches torch.softmax(weight.float(), dim=-1)).
    w_max = jnp.max(w, axis=-1, keepdims=True)
    w_exp = jnp.exp(w - w_max)
    denom = jnp.sum(w_exp, axis=-1, keepdims=True)
    # EUP approximate reciprocal: frees VALU bundles (standard flash-fwd pattern).
    p = (w_exp * pl.reciprocal(denom, approx=True)).astype(v.dtype)

    # out[b, c, t] = sum_s v[b, c, s] * p[b, t, s]          ('bcs,bts->bct')
    a = lax.dot_general(
        v, p,
        dimension_numbers=(((2,), (2,)), ((0,), (0,))),
        preferred_element_type=jnp.float32,
    )                                                      # [Bh, C, T] f32
    o_ref[0] = a.astype(o_ref.dtype)


def _pick_head_block(n_heads, ch, length, itemsize, vmem_budget_bytes):
    """Largest divisor of n_heads whose per-step working set fits the VMEM budget."""
    best = 1
    for bh in range(1, n_heads + 1):
        if n_heads % bh:
            continue
        # q/k/v/out tiles, double-buffered by the BlockSpec pipeline.
        io_bytes = 2 * 4 * bh * ch * length * itemsize
        # f32 logits / exp / probs plus the f32 accumulator temporaries.
        tmp_bytes = 3 * bh * length * length * 4 + 2 * bh * ch * length * 4
        if io_bytes + tmp_bytes <= vmem_budget_bytes:
            best = bh
    return best


def qkv_attention(qkv, n_heads, head_block=None):
    """Pallas equivalent of QKVAttention.forward.

    :param qkv: [N, 3*H*C, T] array of concatenated Qs, Ks, Vs.
    :return: [N, H*C, T] array after attention.
    """
    bs, width, length = qkv.shape
    assert width % (3 * n_heads) == 0
    ch = width // (3 * n_heads)
    scale = 1.0 / math.sqrt(math.sqrt(ch))

    # Free reshape (row-major contiguity preserved): make the head axis explicit.
    # Heads [0, H) are Q, [H, 2H) are K, [2H, 3H) are V — exactly the channel
    # layout produced by torch's chunk(3, dim=1) + .view(bs*H, ch, T).
    qkv4 = qkv.reshape(bs, 3 * n_heads, ch, length)

    if head_block is None:
        # Budget well under v7x's 32 MiB scoped / 64 MiB physical VMEM.
        head_block = _pick_head_block(
            n_heads, ch, length, qkv.dtype.itemsize,
            vmem_budget_bytes=16 * 1024 * 1024,
        )
    assert n_heads % head_block == 0
    n_hg = n_heads // head_block   # head-groups per batch element

    blk = (1, head_block, ch, length)
    kernel = functools.partial(_qkv_attention_kernel, scale_sq=scale * scale)

    out = pl.pallas_call(
        kernel,
        out_shape=jax.ShapeDtypeStruct((bs, n_heads, ch, length), qkv.dtype),
        grid_spec=pltpu.PrefetchScalarGridSpec(
            num_scalar_prefetch=0,
            grid=(bs, n_hg),
            in_specs=[
                pl.BlockSpec(blk, lambda n, hb: (n, hb, 0, 0)),             # Q heads
                pl.BlockSpec(blk, lambda n, hb: (n, n_hg + hb, 0, 0)),      # K heads
                pl.BlockSpec(blk, lambda n, hb: (n, 2 * n_hg + hb, 0, 0)),  # V heads
            ],
            out_specs=pl.BlockSpec(blk, lambda n, hb: (n, hb, 0, 0)),
        ),
        compiler_params=pltpu.CompilerParams(
            # Independent grid axes -> sharded across v7x's two TensorCores.
            dimension_semantics=("parallel", "parallel"),
            # Explicit scoped-VMEM cap, valid on v5e/v6e (128 MiB) and v7x (64 MiB).
            vmem_limit_bytes=32 * 1024 * 1024,
        ),
    )(qkv4, qkv4, qkv4)

    # TODO(synk): for production sequence lengths (T >= ~2048) the monolithic
    # [T, T] logits block must be replaced by a flash-style online-softmax loop
    # over key tiles (extra 'arbitrary' grid axis) to bound VMEM on v6e/v7x.
    return out.reshape(bs, n_heads * ch, length)


def _reference(qkv, n_heads):
    """Pure-JAX reference mirroring the PyTorch forward exactly."""
    bs, width, length = qkv.shape
    ch = width // (3 * n_heads)
    q, k, v = jnp.split(qkv, 3, axis=1)
    q = q.reshape(bs * n_heads, ch, length)
    k = k.reshape(bs * n_heads, ch, length)
    v = v.reshape(bs * n_heads, ch, length)
    scale = 1.0 / math.sqrt(math.sqrt(ch))
    weight = jnp.einsum("bct,bcs->bts", q * scale, k * scale)
    weight = jax.nn.softmax(weight.astype(jnp.float32), axis=-1).astype(weight.dtype)
    a = jnp.einsum("bts,bcs->bct", weight, v)
    return a.reshape(bs, -1, length)


if __name__ == "__main__":
    # N=2 batches, H=4 heads, C=8 channels/head, T=16  ->  qkv width = 3*H*C = 96.
    N, H, C, T = 2, 4, 8, 16
    key = jax.random.PRNGKey(0)
    qkv = jax.random.normal(key, (N, 3 * H * C, T), dtype=jnp.float32)

    out = qkv_attention(qkv, n_heads=H)
    out = jax.block_until_ready(out)

    ref = _reference(qkv, n_heads=H)
    assert out.shape == (N, H * C, T), out.shape
    # Tolerance accounts for the EUP approximate-reciprocal softmax normalization
    # (~1e-4 relative) requested by the perf review; structural/indexing bugs
    # would produce O(1) errors.
    max_err = float(jnp.max(jnp.abs(out - ref)))
    assert jnp.allclose(out, ref, atol=2e-3, rtol=2e-3), max_err

    print("KERNEL_OK")
</pallas_src>

<mosaic_0001>
module attributes {stable_mosaic.version = 11 : i64} {
  func.func @_qkv_attention_kernel(%arg0: i32, %arg1: i32, %arg2: memref<1x4x8x16xf32, #tpu.memory_space<vmem>>, %arg3: memref<1x4x8x16xf32, #tpu.memory_space<vmem>>, %arg4: memref<1x4x8x16xf32, #tpu.memory_space<vmem>>, %arg5: memref<1x4x8x16xf32, #tpu.memory_space<vmem>>) attributes {dimension_semantics = [#tpu.dimension_semantics<parallel>, #tpu.dimension_semantics<parallel>], iteration_bounds = array<i64: 2, 1>, scalar_prefetch = 0 : i64, scratch_operands = 0 : i64, tpu.core_type = #tpu.core_type<tc>, window_params = [{transform_indices = @transform_0, window_bounds = array<i64: 1, 4, 8, 16>}, {transform_indices = @transform_1, window_bounds = array<i64: 1, 4, 8, 16>}, {transform_indices = @transform_2, window_bounds = array<i64: 1, 4, 8, 16>}, {transform_indices = @transform_3, window_bounds = array<i64: 1, 4, 8, 16>}]} {
    %c0 = arith.constant 0 : index
    %c0_0 = arith.constant 0 : index
    %c0_1 = arith.constant 0 : index
    %c0_2 = arith.constant 0 : index
    %0 = vector.load %arg2[%c0, %c0_0, %c0_1, %c0_2] : memref<1x4x8x16xf32, #tpu.memory_space<vmem>>, vector<1x4x8x16xf32>
    %1 = vector.shape_cast %0 : vector<1x4x8x16xf32> to vector<4x8x16xf32>
    %c0_3 = arith.constant 0 : index
    %c0_4 = arith.constant 0 : index
    %c0_5 = arith.constant 0 : index
    %c0_6 = arith.constant 0 : index
    %2 = vector.load %arg3[%c0_3, %c0_4, %c0_5, %c0_6] : memref<1x4x8x16xf32, #tpu.memory_space<vmem>>, vector<1x4x8x16xf32>
    %3 = vector.shape_cast %2 : vector<1x4x8x16xf32> to vector<4x8x16xf32>
    %c0_7 = arith.constant 0 : index
    %c0_8 = arith.constant 0 : index
    %c0_9 = arith.constant 0 : index
    %c0_10 = arith.constant 0 : index
    %4 = vector.load %arg4[%c0_7, %c0_8, %c0_9, %c0_10] : memref<1x4x8x16xf32, #tpu.memory_space<vmem>>, vector<1x4x8x16xf32>
    %5 = vector.shape_cast %4 : vector<1x4x8x16xf32> to vector<4x8x16xf32>
    %cst = arith.constant dense<0.000000e+00> : vector<4x16x16xf32>
    %6 = tpu.matmul %1, %3, %cst {dimension_numbers = #tpu.dot_dimension_numbers<[1], [1], [2], [2], [0, 0, 0, 2, 1, 2], [0], [0]>} : vector<4x8x16xf32>, vector<4x8x16xf32>, vector<4x16x16xf32> -> vector<4x16x16xf32>
    %cst_11 = arith.constant 0.353553385 : f32
    %7 = vector.broadcast %cst_11 : f32 to vector<4x16x16xf32>
    %8 = arith.mulf %6, %7 : vector<4x16x16xf32>
    %cst_12 = arith.constant dense<0xFF800000> : vector<4x16xf32>
    %9 = vector.multi_reduction <maximumf>, %8, %cst_12 [2] : vector<4x16x16xf32> to vector<4x16xf32>
    %10 = vector.shape_cast %9 : vector<4x16xf32> to vector<4x16x1xf32>
    %11 = vector.broadcast %10 : vector<4x16x1xf32> to vector<4x16x16xf32>
    %12 = arith.subf %8, %11 : vector<4x16x16xf32>
    %13 = math.exp %12 : vector<4x16x16xf32>
    %cst_13 = arith.constant dense<0.000000e+00> : vector<4x16xf32>
    %14 = vector.multi_reduction <add>, %13, %cst_13 [2] : vector<4x16x16xf32> to vector<4x16xf32>
    %15 = vector.shape_cast %14 : vector<4x16xf32> to vector<4x16x1xf32>
    %16 = tpu.reciprocal %15 {approx = true} : vector<4x16x1xf32> -> vector<4x16x1xf32>
    %17 = vector.broadcast %16 : vector<4x16x1xf32> to vector<4x16x16xf32>
    %18 = arith.mulf %13, %17 : vector<4x16x16xf32>
    %cst_14 = arith.constant dense<0.000000e+00> : vector<4x8x16xf32>
    %19 = tpu.matmul %5, %18, %cst_14 {dimension_numbers = #tpu.dot_dimension_numbers<[2], [2], [1], [1], [0, 0, 0, 1, 1, 1], [0], [0]>} : vector<4x8x16xf32>, vector<4x16x16xf32>, vector<4x8x16xf32> -> vector<4x8x16xf32>
    %c0_15 = arith.constant 0 : index
    %c0_16 = arith.constant 0 : index
    %c0_17 = arith.constant 0 : index
    %c0_18 = arith.constant 0 : index
    %20 = vector.load %arg5[%c0_15, %c0_16, %c0_17, %c0_18] : memref<1x4x8x16xf32, #tpu.memory_space<vmem>>, vector<1x4x8x16xf32>
    %21 = vector.shape_cast %20 : vector<1x4x8x16xf32> to vector<4x8x16xf32>
    %22 = vector.shape_cast %19 : vector<4x8x16xf32> to vector<1x4x8x16xf32>
    tpu.vector_store %arg5[%c0_15, %c0_16, %c0_17, %c0_18], %22 {strides = array<i32>} : memref<1x4x8x16xf32, #tpu.memory_space<vmem>>, vector<1x4x8x16xf32>,
    return
  }
  func.func @transform_0(%arg0: i32, %arg1: i32) -> (i32, i32, i32, i32) {
    %c0_i32 = arith.constant 0 : i32
    %c0_i32_0 = arith.constant 0 : i32
    %c0_i32_1 = arith.constant 0 : i32
    return %arg0, %arg1, %c0_i32, %c0_i32_0 : i32, i32, i32, i32
  }
  func.func @transform_1(%arg0: i32, %arg1: i32) -> (i32, i32, i32, i32) {
    %c1_i32 = arith.constant 1 : i32
    %0 = arith.addi %c1_i32, %arg1 : i32
    %c0_i32 = arith.constant 0 : i32
    %c0_i32_0 = arith.constant 0 : i32
    %c0_i32_1 = arith.constant 0 : i32
    return %arg0, %0, %c0_i32, %c0_i32_0 : i32, i32, i32, i32
  }
  func.func @transform_2(%arg0: i32, %arg1: i32) -> (i32, i32, i32, i32) {
    %c2_i32 = arith.constant 2 : i32
    %0 = arith.addi %c2_i32, %arg1 : i32
    %c0_i32 = arith.constant 0 : i32
    %c0_i32_0 = arith.constant 0 : i32
    %c0_i32_1 = arith.constant 0 : i32
    return %arg0, %0, %c0_i32, %c0_i32_0 : i32, i32, i32, i32
  }
  func.func @transform_3(%arg0: i32, %arg1: i32) -> (i32, i32, i32, i32) {
    %c0_i32 = arith.constant 0 : i32
    %c0_i32_0 = arith.constant 0 : i32
    %c0_i32_1 = arith.constant 0 : i32
    return %arg0, %arg1, %c0_i32, %c0_i32_0 : i32, i32, i32, i32
  }
}

</mosaic_0001>

<llo_original>
// kernel: tpu_custom_call.1
$region0: #{tpu_custom_call.1}
  #allocation0 [shape = 'u32[]', space=smem, size = 0x4, offset = 0x4, fixed_abs, tag = 'smem constant byte address 0x4 - core index']
  #allocation1 [shape = 'u32[144,128]{1,0:T(1,128)}', space=vmem, size = 0x12000, scoped, tag = 'internal scratch']
  %s0 = inlined_call_operand.hbm [shape: f32[2,12,8,16], index: 0, kind: input, shape index: {}]
  %s1 = inlined_call_operand.hbm [shape: f32[2,12,8,16], index: 1, kind: input, shape index: {}]
  %s2 = inlined_call_operand.hbm [shape: f32[2,12,8,16], index: 2, kind: input, shape index: {}]
  %s3 = inlined_call_operand.hbm [shape: f32[2,4,8,16], index: 3, kind: output, shape index: {}]
  %s4 = sld [smem:[#allocation0]]
  $region57: #{tpu_custom_call.1} parent=0
    _
  %s6 = ssub.s32 1, %s4
  %s7 = scalar_select 0, %s6, %s4
  $region1: #{tpu_custom_call.1} parent=0
    #allocation2 [shape = 'u8[32768]{0}', space=vmem, size = 0x8000, scoped, tag = 'input window, operand 0']
    #allocation3 [shape = 's32[2]{0}', space=sflag, size = 0x8, scoped, tag = 'scoped memory for tpu_custom_call.1']
    #allocation4 [shape = 's32[2]{0}', space=sflag, size = 0x8, scoped, tag = 'scoped memory for tpu_custom_call.1']
    #allocation5 [shape = 'u8[32768]{0}', space=vmem, size = 0x8000, scoped, tag = 'input window, operand 1']
    #allocation6 [shape = 's32[2]{0}', space=sflag, size = 0x8, scoped, tag = 'scoped memory for tpu_custom_call.1']
    #allocation7 [shape = 'u8[32768]{0}', space=vmem, size = 0x8000, scoped, tag = 'input window, operand 2']
    #allocation8 [shape = 'u8[32768]{0}', space=vmem, size = 0x8000, scoped, tag = 'output window, operand 0']
    %8 = vsyncpa [#allocation3], 0
    %s9 = scalar_lea.sflag [#allocation3], 1
    %10 = vsyncpa %s9, 0
    %11 = vsyncpa [#allocation6], 0
    %s12 = scalar_lea.sflag [#allocation6], 1
    %13 = vsyncpa %s12, 0
    %14 = vsyncpa [#allocation4], 0
    %s15 = scalar_lea.sflag [#allocation4], 1
    %16 = vsyncpa %s15, 0
    loop: start=0, step=1, limit=4
    $region2: #{tpu_custom_call.1} parent=1 // loop_pre_header
      _
    $region3: #{tpu_custom_call.1} parent=1 // loop_header
      %s18 = sphi 0, %s22
      %p19 = scmp.ge.s32.totalorder %s18, 4
      %s25 = sphi 0, %s37
      %s26 = sphi 0, %s33
      %s27 = sphi 0, %s25
      %s28 = sphi 0, %s26
      %s29 = sphi 0, %s27
      %s30 = sphi 0, %s28
      %s42 = sphi 0, %s44
      %s45 = sphi 0, %s42
      %s46 = sphi 0, %s45
      %s62 = sphi 0, %s46
      %s72 = sphi 0, %s74
      %s75 = sphi 0, %s72
      %s76 = sphi 0, %s75
      %s92 = sphi 0, %s76
      %s102 = sphi 0, %s104
      %s105 = sphi 0, %s102
      %s106 = sphi 0, %s105
      %s122 = sphi 0, %s106
      %s130 = sphi 0, %s132
      %s133 = sphi 0, %s130
      %s134 = sphi 0, %s133
      %s150 = sphi 0, %s134
    $region4: #{tpu_custom_call.1} parent=1 // loop_header_branch
      %21 = sbr.rel (%p19) target = $region8
    $region5: #{tpu_custom_call.1} parent=1 // loop_body
      %s23 = ssub.s32 %s18, 1
      %s24 = ssub.s32 %s18, 2
      %s31 = sadd.s32 1, %s26
      %p32 = scmp.ge.s32.totalorder %s31, 1
      %s33 = scalar_select %p32, 0, %s31
      %s34 = sadd.s32 1, %s25
      %s35 = scalar_select %p32, %s34, %s25
      %p36 = scmp.ge.s32.totalorder %s35, 2
      %s37 = scalar_select %p36, 0, %s35
      %s38 = ssub.s32 %s25, %s37
      %s39 = ssub.s32 %s26, %s33
      %s40 = sor.u32 %s38, %s39
      %p41 = scmp.eq.s32.totalorder %s40, 0
      %s43 = sadd.s32 %s42, 1
      %s44 = scalar_select %p41, %s42, %s43
      %p47 = pneg %p41
      %p48 = scmp.eq.s32.totalorder %s18, 1
      %p49 = por %p47, %p48
      %p50 = scmp.ne.s32.totalorder %s42, %s45
      %p51 = scmp.eq.s32.totalorder %s18, 0
      %p52 = por %p50, %p51
      %p53 = scmp.ne.s32.totalorder %s42, %s45
      %p54 = scmp.eq.s32.totalorder %s23, 1
      %p55 = por %p53, %p54
      %p56 = scmp.ne.s32.totalorder %s45, %s46
      %p57 = scmp.eq.s32.totalorder %s23, 0
      %p58 = por %p56, %p57
      %p59 = scmp.ne.s32.totalorder %s45, %s46
      %p60 = scmp.eq.s32.totalorder %s24, 1
      %p61 = por %p59, %p60
      %p63 = scmp.ne.s32.totalorder %s46, %s62
      %p64 = scmp.eq.s32.totalorder %s24, 0
      %p65 = por %p63, %p64
      %s66 = sadd.s32 %s26, 1
      %s67 = sadd.s32 %s33, 1
      %s68 = ssub.s32 %s25, %s37
      %s69 = ssub.s32 %s66, %s67
      %s70 = sor.u32 %s68, %s69
      %p71 = scmp.eq.s32.totalorder %s70, 0
      %s73 = sadd.s32 %s72, 1
      %s74 = scalar_select %p71, %s72, %s73
      %p77 = pneg %p71
      %p78 = scmp.eq.s32.totalorder %s18, 1
      %p79 = por %p77, %p78
      %p80 = scmp.ne.s32.totalorder %s72, %s75
      %p81 = scmp.eq.s32.totalorder %s18, 0
      %p82 = por %p80, %p81
      %p83 = scmp.ne.s32.totalorder %s72, %s75
      %p84 = scmp.eq.s32.totalorder %s23, 1
      %p85 = por %p83, %p84
      %p86 = scmp.ne.s32.totalorder %s75, %s76
      %p87 = scmp.eq.s32.totalorder %s23, 0
      %p88 = por %p86, %p87
      %p89 = scmp.ne.s32.totalorder %s75, %s76
      %p90 = scmp.eq.s32.totalorder %s24, 1
      %p91 = por %p89, %p90
      %p93 = scmp.ne.s32.totalorder %s76, %s92
      %p94 = scmp.eq.s32.totalorder %s24, 0
      %p95 = por %p93, %p94
      %s96 = sadd.s32 %s26, 2
      %s97 = sadd.s32 %s33, 2
      %s98 = ssub.s32 %s25, %s37
      %s99 = ssub.s32 %s96, %s97
      %s100 = sor.u32 %s98, %s99
      %p101 = scmp.eq.s32.totalorder %s100, 0
      %s103 = sadd.s32 %s102, 1
      %s104 = scalar_select %p101, %s102, %s103
      %p107 = pneg %p101
      %p108 = scmp.eq.s32.totalorder %s18, 1
      %p109 = por %p107, %p108
      %p110 = scmp.ne.s32.totalorder %s102, %s105
      %p111 = scmp.eq.s32.totalorder %s18, 0
      %p112 = por %p110, %p111
      %p113 = scmp.ne.s32.totalorder %s102, %s105
      %p114 = scmp.eq.s32.totalorder %s23, 1
      %p115 = por %p113, %p114
      %p116 = scmp.ne.s32.totalorder %s105, %s106
      %p117 = scmp.eq.s32.totalorder %s23, 0
      %p118 = por %p116, %p117
      %p119 = scmp.ne.s32.totalorder %s105, %s106
      %p120 = scmp.eq.s32.totalorder %s24, 1
      %p121 = por %p119, %p120
      %p123 = scmp.ne.s32.totalorder %s106, %s122
      %p124 = scmp.eq.s32.totalorder %s24, 0
      %p125 = por %p123, %p124
      %s126 = ssub.s32 %s25, %s37
      %s127 = ssub.s32 %s26, %s33
      %s128 = sor.u32 %s126, %s127
      %p129 = scmp.eq.s32.totalorder %s128, 0
      %s131 = sadd.s32 %s130, 1
      %s132 = scalar_select %p129, %s130, %s131
      %p135 = pneg %p129
      %p136 = scmp.eq.s32.totalorder %s18, 1
      %p137 = por %p135, %p136
      %p138 = scmp.ne.s32.totalorder %s130, %s133
      %p139 = scmp.eq.s32.totalorder %s18, 0
      %p140 = por %p138, %p139
      %p141 = scmp.ne.s32.totalorder %s130, %s133
      %p142 = scmp.eq.s32.totalorder %s23, 1
      %p143 = por %p141, %p142
      %p144 = scmp.ne.s32.totalorder %s133, %s134
      %p145 = scmp.eq.s32.totalorder %s23, 0
      %p146 = por %p144, %p145
      %p147 = scmp.ne.s32.totalorder %s133, %s134
      %p148 = scmp.eq.s32.totalorder %s24, 1
      %p149 = por %p147, %p148
      %p151 = scmp.ne.s32.totalorder %s134, %s150
      %p152 = scmp.eq.s32.totalorder %s24, 0
      %p153 = por %p151, %p152
      %p154 = scmp.le.s32.totalorder 1, %s18
      %p155 = scmp.lt.s32.totalorder %s18, 3
      %p156 = pnand %p154, %p155
      %p157 = pneg %p156
      // Predicated region
      $region9: #{tpu_custom_call.1} parent=5 // pred_check
        _
      $region10: #{tpu_custom_call.1} parent=5 // pred_check_branch
        %159 = sbr.rel (%p156) target = $region12
      $region11: #{tpu_custom_call.1} parent=5 // pred_region
        %s160 = ssub.s32 %s18, 1
      $region12: #{tpu_custom_call.1} parent=5 // pred_fallthru
        _
      %p161 = scmp.lt.s32.totalorder %s18, 2
      // Predicated region
      $region13: #{tpu_custom_call.1} parent=5 // pred_check
        %p162 = pneg %p161
      $region14: #{tpu_custom_call.1} parent=5 // pred_check_branch
        %164 = sbr.rel (%p162) target = $region16
      $region15: #{tpu_custom_call.1} parent=5 // pred_region
        // Predicated region
        $region17: #{tpu_custom_call.1} parent=15 // pred_check
          %p165 = pneg %p52
        $region18: #{tpu_custom_call.1} parent=15 // pred_check_branch
          %167 = sbr.rel (%p165) target = $region20
        $region19: #{tpu_custom_call.1} parent=15 // pred_region
          %s168 = sand.u32 %s42, 1
          %s169 = scalar_lea.sflag [#allocation3], %s168
          %s170 = sand.u32 %s42, 1
          %s171 = smul.addr %s170, 32
          %s172 = scalar_lea.vmem [#allocation2], %s171
          %s173 = smul.u32 4, %s26
          %s175 = ssub.s32 512, 512
          %176 = vsyncadd %s169, %s175
          %s177 = smul.addr %s25, 12
          %s178 = sadd.s32 %s173, %s177
          %s179 = smul.addr %s178, 128
          %s180 = scalar_lea.hbm %s0, %s179
          %s181 = sshll.u32 %s172, 4
          %s182 = int_to_ptr.vmem [resolvable:$true] %s181
          %187 = dma.hbm_to_vmem [thread:$0]  %s180, 512, %s182, %s169, 128, 128, 8
        $region20: #{tpu_custom_call.1} parent=15 // pred_fallthru
          _
        // Predicated region
        $region21: #{tpu_custom_call.1} parent=15 // pred_check
          %p188 = pneg %p82
        $region22: #{tpu_custom_call.1} parent=15 // pred_check_branch
          %190 = sbr.rel (%p188) target = $region24
        $region23: #{tpu_custom_call.1} parent=15 // pred_region
          %s191 = sand.u32 %s18, 1
          %s192 = scalar_lea.sflag [#allocation6], %s191
          %s193 = sand.u32 %s72, 1
          %s194 = smul.addr %s193, 32
          %s195 = scalar_lea.vmem [#allocation5], %s194
          %s196 = sadd.s32 %s26, 1
          %s197 = smul.u32 4, %s196
          %s199 = ssub.s32 512, 512
          %200 = vsyncadd %s192, %s199
          %s201 = smul.addr %s25, 12
          %s202 = sadd.s32 %s197, %s201
          %s203 = smul.addr %s202, 128
          %s204 = scalar_lea.hbm %s1, %s203
          %s205 = sshll.u32 %s195, 4
          %s206 = int_to_ptr.vmem [resolvable:$true] %s205
          %211 = dma.hbm_to_vmem [thread:$0]  %s204, 512, %s206, %s192, 128, 128, 8
        $region24: #{tpu_custom_call.1} parent=15 // pred_fallthru
          _
        // Predicated region
        $region25: #{tpu_custom_call.1} parent=15 // pred_check
          %p212 = pneg %p112
        $region26: #{tpu_custom_call.1} parent=15 // pred_check_branch
          %214 = sbr.rel (%p212) target = $region28
        $region27: #{tpu_custom_call.1} parent=15 // pred_region
          %s215 = sand.u32 %s18, 1
          %s216 = scalar_lea.sflag [#allocation6], %s215
          %s217 = sand.u32 %s102, 1
          %s218 = smul.addr %s217, 32
          %s219 = scalar_lea.vmem [#allocation7], %s218
          %s220 = sadd.s32 %s26, 2
          %s221 = smul.u32 4, %s220
          %s223 = ssub.s32 512, 512
          %224 = vsyncadd %s216, %s223
          %s225 = smul.addr %s25, 12
          %s226 = sadd.s32 %s221, %s225
          %s227 = smul.addr %s226, 128
          %s228 = scalar_lea.hbm %s2, %s227
          %s229 = sshll.u32 %s219, 4
          %s230 = int_to_ptr.vmem [resolvable:$true] %s229
          %235 = dma.hbm_to_vmem [thread:$0]  %s228, 512, %s230, %s216, 128, 128, 8
        $region28: #{tpu_custom_call.1} parent=15 // pred_fallthru
          _
      $region16: #{tpu_custom_call.1} parent=5 // pred_fallthru
        _
      %p236 = scmp.le.s32.totalorder 1, %s18
      %p237 = scmp.lt.s32.totalorder %s18, 3
      %p238 = pnand %p236, %p237
      %p239 = pneg %p238
      // Predicated region
      $region29: #{tpu_custom_call.1} parent=5 // pred_check
        _
      $region30: #{tpu_custom_call.1} parent=5 // pred_check_branch
        %241 = sbr.rel (%p238) target = $region32
      $region31: #{tpu_custom_call.1} parent=5 // pred_region
        %s242 = ssub.s32 %s18, 1
        %s243 = sand.u32 %s45, 1
        %s244 = scalar_lea.sflag [#allocation3], %s243
        %s245 = sand.u32 %s45, 1
        %s246 = smul.addr %s245, 32
        %s247 = scalar_lea.vmem [#allocation2], %s246
        // Predicated region
        $region33: #{tpu_custom_call.1} parent=31 // pred_check
          %p248 = pneg %p58
        $region34: #{tpu_custom_call.1} parent=31 // pred_check_branch
          %250 = sbr.rel (%p248) target = $region36
        $region35: #{tpu_custom_call.1} parent=31 // pred_region
          %251 = dma.done %s244, 512
        $region36: #{tpu_custom_call.1} parent=31 // pred_fallthru
          _
        %s252 = sand.u32 %s23, 1
        %s253 = scalar_lea.sflag [#allocation6], %s252
        %s254 = sand.u32 %s75, 1
        %s255 = smul.addr %s254, 32
        %s256 = scalar_lea.vmem [#allocation5], %s255
        // Predicated region
        $region37: #{tpu_custom_call.1} parent=31 // pred_check
          %p257 = pneg %p88
        $region38: #{tpu_custom_call.1} parent=31 // pred_check_branch
          %259 = sbr.rel (%p257) target = $region40
        $region39: #{tpu_custom_call.1} parent=31 // pred_region
          %260 = dma.done %s253, 512
        $region40: #{tpu_custom_call.1} parent=31 // pred_fallthru
          _
        %s261 = sand.u32 %s23, 1
        %s262 = scalar_lea.sflag [#allocation6], %s261
        %s263 = sand.u32 %s105, 1
        %s264 = smul.addr %s263, 32
        %s265 = scalar_lea.vmem [#allocation7], %s264
        // Predicated region
        $region41: #{tpu_custom_call.1} parent=31 // pred_check
          %p266 = pneg %p118
        $region42: #{tpu_custom_call.1} parent=31 // pred_check_branch
          %268 = sbr.rel (%p266) target = $region44
        $region43: #{tpu_custom_call.1} parent=31 // pred_region
          %269 = dma.done %s262, 512
        $region44: #{tpu_custom_call.1} parent=31 // pred_fallthru
          _
        %s270 = sand.u32 %s45, 1
        %s271 = scalar_lea.sflag [#allocation3], %s270
        %s272 = sand.u32 %s45, 1
        %s273 = smul.addr %s272, 32
        %s274 = scalar_lea.vmem [#allocation2], %s273
        %p275 = pneg %p58
        %p276 = pneg %p55
        %s277 = sand.u32 %s23, 1
        %s278 = scalar_lea.sflag [#allocation6], %s277
        %s279 = sand.u32 %s75, 1
        %s280 = smul.addr %s279, 32
        %s281 = scalar_lea.vmem [#allocation5], %s280
        %p282 = pneg %p88
        %p283 = pneg %p85
        %s284 = sand.u32 %s23, 1
        %s285 = scalar_lea.sflag [#allocation6], %s284
        %s286 = sand.u32 %s105, 1
        %s287 = smul.addr %s286, 32
        %s288 = scalar_lea.vmem [#allocation7], %s287
        %p289 = pneg %p118
        %p290 = pneg %p115
        %p291 = pneg %p146
        %p292 = pneg %p143
        %s293 = sand.u32 %s133, 1
        %s294 = scalar_lea.sflag [#allocation4], %s293
        %s295 = sand.u32 %s133, 1
        %s296 = smul.addr %s295, 32
        %s297 = scalar_lea.vmem [#allocation8], %s296
        %s298 = smul.u32 4, %s28
        %s299 = sadd.s32 %s28, 1
        %s300 = smul.u32 4, %s299
        %s301 = sadd.s32 %s28, 2
        %s302 = smul.u32 4, %s301
        %s303 = smul.u32 4, %s28
        %v304 = vld [vmem:[%s247] sm:$0xff]
        %v305 = vld [vmem:[%s247 + $0x8] sm:$0xff]
        %v306 = vld [vmem:[%s247 + $0x10] sm:$0xff]
        %v307 = vld [vmem:[%s247 + $0x18] sm:$0xff]
        %v308 = vld [vmem:[%s256] sm:$0xff]
        %v309 = vld [vmem:[%s256 + $0x8] sm:$0xff]
        %v310 = vld [vmem:[%s256 + $0x10] sm:$0xff]
        %v311 = vld [vmem:[%s256 + $0x18] sm:$0xff]
        %v312 = vld [vmem:[%s265] sm:$0xff]
        %v313 = vld [vmem:[%s265 + $0x8] sm:$0xff]
        %v314 = vld [vmem:[%s265 + $0x10] sm:$0xff]
        %v315 = vld [vmem:[%s265 + $0x18] sm:$0xff]
        %316 = vxpose.xlu0.b32.start [1/16] %v304, 128
        %317 = vxpose.xlu0.b32.cont [2/16] 0.0, 128
        %318 = vxpose.xlu0.b32.cont [3/16] 0.0, 128
        %319 = vxpose.xlu0.b32.cont [4/16] 0.0, 128
        %320 = vxpose.xlu0.b32.cont [5/16] 0.0, 128
        %321 = vxpose.xlu0.b32.cont [6/16] 0.0, 128
        %322 = vxpose.xlu0.b32.cont [7/16] 0.0, 128
        %323 = vxpose.xlu0.b32.cont [8/16] 0.0, 128
        %324 = vxpose.xlu0.b32.cont [9/16] 0.0, 128
        %325 = vxpose.xlu0.b32.cont [10/16] 0.0, 128
        %326 = vxpose.xlu0.b32.cont [11/16] 0.0, 128
        %327 = vxpose.xlu0.b32.cont [12/16] 0.0, 128
        %328 = vxpose.xlu0.b32.cont [13/16] 0.0, 128
        %329 = vxpose.xlu0.b32.cont [14/16] 0.0, 128
        %330 = vxpose.xlu0.b32.cont [15/16] 0.0, 128
        %331 = vxpose.xlu0.b32.end [16/16] 0.0, 128
        %v332 = vpop.trf.xlu0
        %v333 = vpop.trf.xlu0
        %v334 = vpop.trf.xlu0
        %v335 = vpop.trf.xlu0
        %v336 = vpop.trf.xlu0
        %v337 = vpop.trf.xlu0
        %v338 = vpop.trf.xlu0
        %v339 = vpop.trf.xlu0
        %v340 = vpop.trf.xlu0
        %v341 = vpop.trf.xlu0
        %v342 = vpop.trf.xlu0
        %v343 = vpop.trf.xlu0
        %v344 = vpop.trf.xlu0
        %v345 = vpop.trf.xlu0
        %v346 = vpop.trf.xlu0
        %v347 = vpop.trf.xlu0
        %vm348 = vcmask 64512
        %v350 = vsel %vm348, %v332, 0
        %v353 = vsel %vm348, %v333, 0
        %355 = vmatprep.subr.mxu0 0.0
        %356 = vmatpush1.msra.mxu0 0.0
        %357 = vmatprep.subr.mxu0 0.0
        %358 = vmatpush1.msra.mxu0 0.0
        %359 = vmatprep.subr.mxu0 0.0
        %360 = vmatpush1.msra.mxu0 0.0
        %361 = vmatprep.subr.mxu0 0.0
        %362 = vmatpush1.msra.mxu0 0.0
        %363 = vmatprep.subr.mxu0 0.0
        %364 = vmatpush1.msra.mxu0 0.0
        %365 = vmatprep.subr.mxu0 0.0
        %366 = vmatpush1.msra.mxu0 0.0
        %367 = vmatprep.subr.mxu0 0.0
        %368 = vmatpush1.msra.mxu0 0.0
        %369 = vmatprep.subr.mxu0 0.0
        %370 = vmatpush1.msra.mxu0 0.0
        %371 = vmatprep.subr.mxu0 0.0
        %372 = vmatpush1.msra.mxu0 0.0
        %373 = vmatprep.subr.mxu0 0.0
        %374 = vmatpush1.msra.mxu0 0.0
        %375 = vmatprep.subr.mxu0 0.0
        %376 = vmatpush1.msra.mxu0 0.0
        %377 = vmatprep.subr.mxu0 0.0
        %378 = vmatpush1.msra.mxu0 0.0
        %379 = vmatprep.subr.mxu0 0.0
        %380 = vmatpush1.msra.mxu0 0.0
        %381 = vmatprep.subr.mxu0 0.0
        %382 = vmatpush1.msra.mxu0 0.0
        %383 = vmatprep.subr.mxu0 0.0
        %384 = vmatpush1.msra.mxu0 0.0
        %385 = vmatprep.subr.mxu0 0.0
        %386 = vmatpush1.msra.mxu0 %v308
        %387 = vmatprep.subr.mxu0 0.0
        %388 = vmatpush2.msra.mxu0 0.0
        %389 = vmatprep.subr.mxu0 0.0
        %390 = vmatpush2.msra.mxu0 0.0
        %391 = vmatprep.subr.mxu0 0.0
        %392 = vmatpush2.msra.mxu0 0.0
        %393 = vmatprep.subr.mxu0 0.0
        %394 = vmatpush2.msra.mxu0 0.0
        %395 = vmatprep.subr.mxu0 0.0
        %396 = vmatpush2.msra.mxu0 0.0
        %397 = vmatprep.subr.mxu0 0.0
        %398 = vmatpush2.msra.mxu0 0.0
        %399 = vmatprep.subr.mxu0 0.0
        %400 = vmatpush2.msra.mxu0 0.0
        %401 = vmatprep.subr.mxu0 0.0
        %402 = vmatpush2.msra.mxu0 0.0
        %403 = vmatprep.subr.mxu0 0.0
        %404 = vmatpush2.msra.mxu0 0.0
        %405 = vmatprep.subr.mxu0 0.0
        %406 = vmatpush2.msra.mxu0 0.0
        %407 = vmatprep.subr.mxu0 0.0
        %408 = vmatpush2.msra.mxu0 0.0
        %409 = vmatprep.subr.mxu0 0.0
        %410 = vmatpush2.msra.mxu0 0.0
        %411 = vmatprep.subr.mxu0 0.0
        %412 = vmatpush2.msra.mxu0 0.0
        %413 = vmatprep.subr.mxu0 0.0
        %414 = vmatpush2.msra.mxu0 0.0
        %415 = vmatprep.subr.mxu0 0.0
        %416 = vmatpush2.msra.mxu0 0.0
        %417 = vmatprep.subr.mxu0 0.0
        %418 = vmatpush2.msra.mxu0 0.0
        %419 = vmatprep.mubr.f32.mxu0 0.0
        %420 = vmatmul.mubr.f32.gmra.mxu0 %v350
        %v421 = vpop.f32.mrf.mxu0
        %v422 = vadd.f32 0.0, %v421
        %v423 = vpop.f32.mrf.mxu0
        %424 = vmatprep.mubr.f32.mxu0 0.0
        %425 = vmatmul.mubr.f32.gmra.mxu0 %v353
        %v426 = vpop.f32.mrf.mxu0
        %v427 = vadd.f32 0.0, %v426
        %v428 = vpop.f32.mrf.mxu0
        %429 = vdwg.mxu0
        %430 = vxpose.xlu0.b32.start [1/16] %v305, 128
        %431 = vxpose.xlu0.b32.cont [2/16] 0.0, 128
        %432 = vxpose.xlu0.b32.cont [3/16] 0.0, 128
        %433 = vxpose.xlu0.b32.cont [4/16] 0.0, 128
        %434 = vxpose.xlu0.b32.cont [5/16] 0.0, 128
        %435 = vxpose.xlu0.b32.cont [6/16] 0.0, 128
        %436 = vxpose.xlu0.b32.cont [7/16] 0.0, 128
        %437 = vxpose.xlu0.b32.cont [8/16] 0.0, 128
        %438 = vxpose.xlu0.b32.cont [9/16] 0.0, 128
        %439 = vxpose.xlu0.b32.cont [10/16] 0.0, 128
        %440 = vxpose.xlu0.b32.cont [11/16] 0.0, 128
        %441 = vxpose.xlu0.b32.cont [12/16] 0.0, 128
        %442 = vxpose.xlu0.b32.cont [13/16] 0.0, 128
        %443 = vxpose.xlu0.b32.cont [14/16] 0.0, 128
        %444 = vxpose.xlu0.b32.cont [15/16] 0.0, 128
        %445 = vxpose.xlu0.b32.end [16/16] 0.0, 128
        %v446 = vpop.trf.xlu0
        %v447 = vpop.trf.xlu0
        %v448 = vpop.trf.xlu0
        %v449 = vpop.trf.xlu0
        %v450 = vpop.trf.xlu0
        %v451 = vpop.trf.xlu0
        %v452 = vpop.trf.xlu0
        %v453 = vpop.trf.xlu0
        %v454 = vpop.trf.xlu0
        %v455 = vpop.trf.xlu0
        %v456 = vpop.trf.xlu0
        %v457 = vpop.trf.xlu0
        %v458 = vpop.trf.xlu0
        %v459 = vpop.trf.xlu0
        %v460 = vpop.trf.xlu0
        %v461 = vpop.trf.xlu0
        %v463 = vsel %vm348, %v446, 0
        %v466 = vsel %vm348, %v447, 0
        %468 = vmatprep.subr.mxu0 0.0
        %469 = vmatpush1.msra.mxu0 0.0
        %470 = vmatprep.subr.mxu0 0.0
        %471 = vmatpush1.msra.mxu0 0.0
        %472 = vmatprep.subr.mxu0 0.0
        %473 = vmatpush1.msra.mxu0 0.0
        %474 = vmatprep.subr.mxu0 0.0
        %475 = vmatpush1.msra.mxu0 0.0
        %476 = vmatprep.subr.mxu0 0.0
        %477 = vmatpush1.msra.mxu0 0.0
        %478 = vmatprep.subr.mxu0 0.0
        %479 = vmatpush1.msra.mxu0 0.0
        %480 = vmatprep.subr.mxu0 0.0
        %481 = vmatpush1.msra.mxu0 0.0
        %482 = vmatprep.subr.mxu0 0.0
        %483 = vmatpush1.msra.mxu0 0.0
        %484 = vmatprep.subr.mxu0 0.0
        %485 = vmatpush1.msra.mxu0 0.0
        %486 = vmatprep.subr.mxu0 0.0
        %487 = vmatpush1.msra.mxu0 0.0
        %488 = vmatprep.subr.mxu0 0.0
        %489 = vmatpush1.msra.mxu0 0.0
        %490 = vmatprep.subr.mxu0 0.0
        %491 = vmatpush1.msra.mxu0 0.0
        %492 = vmatprep.subr.mxu0 0.0
        %493 = vmatpush1.msra.mxu0 0.0
        %494 = vmatprep.subr.mxu0 0.0
        %495 = vmatpush1.msra.mxu0 0.0
        %496 = vmatprep.subr.mxu0 0.0
        %497 = vmatpush1.msra.mxu0 0.0
        %498 = vmatprep.subr.mxu0 0.0
        %499 = vmatpush1.msra.mxu0 %v309
        %500 = vmatprep.subr.mxu0 0.0
        %501 = vmatpush2.msra.mxu0 0.0
        %502 = vmatprep.subr.mxu0 0.0
        %503 = vmatpush2.msra.mxu0 0.0
        %504 = vmatprep.subr.mxu0 0.0
        %505 = vmatpush2.msra.mxu0 0.0
        %506 = vmatprep.subr.mxu0 0.0
        %507 = vmatpush2.msra.mxu0 0.0
        %508 = vmatprep.subr.mxu0 0.0
        %509 = vmatpush2.msra.mxu0 0.0
        %510 = vmatprep.subr.mxu0 0.0
        %511 = vmatpush2.msra.mxu0 0.0
        %512 = vmatprep.subr.mxu0 0.0
        %513 = vmatpush2.msra.mxu0 0.0
        %514 = vmatprep.subr.mxu0 0.0
        %515 = vmatpush2.msra.mxu0 0.0
        %516 = vmatprep.subr.mxu0 0.0
        %517 = vmatpush2.msra.mxu0 0.0
        %518 = vmatprep.subr.mxu0 0.0
        %519 = vmatpush2.msra.mxu0 0.0
        %520 = vmatprep.subr.mxu0 0.0
        %521 = vmatpush2.msra.mxu0 0.0
        %522 = vmatprep.subr.mxu0 0.0
        %523 = vmatpush2.msra.mxu0 0.0
        %524 = vmatprep.subr.mxu0 0.0
        %525 = vmatpush2.msra.mxu0 0.0
        %526 = vmatprep.subr.mxu0 0.0
        %527 = vmatpush2.msra.mxu0 0.0
        %528 = vmatprep.subr.mxu0 0.0
        %529 = vmatpush2.msra.mxu0 0.0
        %530 = vmatprep.subr.mxu0 0.0
        %531 = vmatpush2.msra.mxu0 0.0
        %532 = vmatprep.mubr.f32.mxu0 0.0
        %533 = vmatmul.mubr.f32.gmra.mxu0 %v463
        %v534 = vpop.f32.mrf.mxu0
        %v535 = vadd.f32 0.0, %v534
        %v536 = vpop.f32.mrf.mxu0
        %537 = vmatprep.mubr.f32.mxu0 0.0
        %538 = vmatmul.mubr.f32.gmra.mxu0 %v466
        %v539 = vpop.f32.mrf.mxu0
        %v540 = vadd.f32 0.0, %v539
        %v541 = vpop.f32.mrf.mxu0
        %542 = vdwg.mxu0
        %543 = vxpose.xlu0.b32.start [1/16] %v306, 128
        %544 = vxpose.xlu0.b32.cont [2/16] 0.0, 128
        %545 = vxpose.xlu0.b32.cont [3/16] 0.0, 128
        %546 = vxpose.xlu0.b32.cont [4/16] 0.0, 128
        %547 = vxpose.xlu0.b32.cont [5/16] 0.0, 128
        %548 = vxpose.xlu0.b32.cont [6/16] 0.0, 128
        %549 = vxpose.xlu0.b32.cont [7/16] 0.0, 128
        %550 = vxpose.xlu0.b32.cont [8/16] 0.0, 128
        %551 = vxpose.xlu0.b32.cont [9/16] 0.0, 128
        %552 = vxpose.xlu0.b32.cont [10/16] 0.0, 128
        %553 = vxpose.xlu0.b32.cont [11/16] 0.0, 128
        %554 = vxpose.xlu0.b32.cont [12/16] 0.0, 128
        %555 = vxpose.xlu0.b32.cont [13/16] 0.0, 128
        %556 = vxpose.xlu0.b32.cont [14/16] 0.0, 128
        %557 = vxpose.xlu0.b32.cont [15/16] 0.0, 128
        %558 = vxpose.xlu0.b32.end [16/16] 0.0, 128
        %v559 = vpop.trf.xlu0
        %v560 = vpop.trf.xlu0
        %v561 = vpop.trf.xlu0
        %v562 = vpop.trf.xlu0
        %v563 = vpop.trf.xlu0
        %v564 = vpop.trf.xlu0
        %v565 = vpop.trf.xlu0
        %v566 = vpop.trf.xlu0
        %v567 = vpop.trf.xlu0
        %v568 = vpop.trf.xlu0
        %v569 = vpop.trf.xlu0
        %v570 = vpop.trf.xlu0
        %v571 = vpop.trf.xlu0
        %v572 = vpop.trf.xlu0
        %v573 = vpop.trf.xlu0
        %v574 = vpop.trf.xlu0
        %v576 = vsel %vm348, %v559, 0
        %v579 = vsel %vm348, %v560, 0
        %581 = vmatprep.subr.mxu0 0.0
        %582 = vmatpush1.msra.mxu0 0.0
        %583 = vmatprep.subr.mxu0 0.0
        %584 = vmatpush1.msra.mxu0 0.0
        %585 = vmatprep.subr.mxu0 0.0
        %586 = vmatpush1.msra.mxu0 0.0
        %587 = vmatprep.subr.mxu0 0.0
        %588 = vmatpush1.msra.mxu0 0.0
        %589 = vmatprep.subr.mxu0 0.0
        %590 = vmatpush1.msra.mxu0 0.0
        %591 = vmatprep.subr.mxu0 0.0
        %592 = vmatpush1.msra.mxu0 0.0
        %593 = vmatprep.subr.mxu0 0.0
        %594 = vmatpush1.msra.mxu0 0.0
        %595 = vmatprep.subr.mxu0 0.0
        %596 = vmatpush1.msra.mxu0 0.0
        %597 = vmatprep.subr.mxu0 0.0
        %598 = vmatpush1.msra.mxu0 0.0
        %599 = vmatprep.subr.mxu0 0.0
        %600 = vmatpush1.msra.mxu0 0.0
        %601 = vmatprep.subr.mxu0 0.0
        %602 = vmatpush1.msra.mxu0 0.0
        %603 = vmatprep.subr.mxu0 0.0
        %604 = vmatpush1.msra.mxu0 0.0
        %605 = vmatprep.subr.mxu0 0.0
        %606 = vmatpush1.msra.mxu0 0.0
        %607 = vmatprep.subr.mxu0 0.0
        %608 = vmatpush1.msra.mxu0 0.0
        %609 = vmatprep.subr.mxu0 0.0
        %610 = vmatpush1.msra.mxu0 0.0
        %611 = vmatprep.subr.mxu0 0.0
        %612 = vmatpush1.msra.mxu0 %v310
        %613 = vmatprep.subr.mxu0 0.0
        %614 = vmatpush2.msra.mxu0 0.0
        %615 = vmatprep.subr.mxu0 0.0
        %616 = vmatpush2.msra.mxu0 0.0
        %617 = vmatprep.subr.mxu0 0.0
        %618 = vmatpush2.msra.mxu0 0.0
        %619 = vmatprep.subr.mxu0 0.0
        %620 = vmatpush2.msra.mxu0 0.0
        %621 = vmatprep.subr.mxu0 0.0
        %622 = vmatpush2.msra.mxu0 0.0
        %623 = vmatprep.subr.mxu0 0.0
        %624 = vmatpush2.msra.mxu0 0.0
        %625 = vmatprep.subr.mxu0 0.0
        %626 = vmatpush2.msra.mxu0 0.0
        %627 = vmatprep.subr.mxu0 0.0
        %628 = vmatpush2.msra.mxu0 0.0
        %629 = vmatprep.subr.mxu0 0.0
        %630 = vmatpush2.msra.mxu0 0.0
        %631 = vmatprep.subr.mxu0 0.0
        %632 = vmatpush2.msra.mxu0 0.0
        %633 = vmatprep.subr.mxu0 0.0
        %634 = vmatpush2.msra.mxu0 0.0
        %635 = vmatprep.subr.mxu0 0.0
        %636 = vmatpush2.msra.mxu0 0.0
        %637 = vmatprep.subr.mxu0 0.0
        %638 = vmatpush2.msra.mxu0 0.0
        %639 = vmatprep.subr.mxu0 0.0
        %640 = vmatpush2.msra.mxu0 0.0
        %641 = vmatprep.subr.mxu0 0.0
        %642 = vmatpush2.msra.mxu0 0.0
        %643 = vmatprep.subr.mxu0 0.0
        %644 = vmatpush2.msra.mxu0 0.0
        %645 = vmatprep.mubr.f32.mxu0 0.0
        %646 = vmatmul.mubr.f32.gmra.mxu0 %v576
        %v647 = vpop.f32.mrf.mxu0
        %v648 = vadd.f32 0.0, %v647
        %v649 = vpop.f32.mrf.mxu0
        %650 = vmatprep.mubr.f32.mxu0 0.0
        %651 = vmatmul.mubr.f32.gmra.mxu0 %v579
        %v652 = vpop.f32.mrf.mxu0
        %v653 = vadd.f32 0.0, %v652
        %v654 = vpop.f32.mrf.mxu0
        %655 = vdwg.mxu0
        %656 = vxpose.xlu0.b32.start [1/16] %v307, 128
        %657 = vxpose.xlu0.b32.cont [2/16] 0.0, 128
        %658 = vxpose.xlu0.b32.cont [3/16] 0.0, 128
        %659 = vxpose.xlu0.b32.cont [4/16] 0.0, 128
        %660 = vxpose.xlu0.b32.cont [5/16] 0.0, 128
        %661 = vxpose.xlu0.b32.cont [6/16] 0.0, 128
        %662 = vxpose.xlu0.b32.cont [7/16] 0.0, 128
        %663 = vxpose.xlu0.b32.cont [8/16] 0.0, 128
        %664 = vxpose.xlu0.b32.cont [9/16] 0.0, 128
        %665 = vxpose.xlu0.b32.cont [10/16] 0.0, 128
        %666 = vxpose.xlu0.b32.cont [11/16] 0.0, 128
        %667 = vxpose.xlu0.b32.cont [12/16] 0.0, 128
        %668 = vxpose.xlu0.b32.cont [13/16] 0.0, 128
        %669 = vxpose.xlu0.b32.cont [14/16] 0.0, 128
        %670 = vxpose.xlu0.b32.cont [15/16] 0.0, 128
        %671 = vxpose.xlu0.b32.end [16/16] 0.0, 128
        %v672 = vpop.trf.xlu0
        %v673 = vpop.trf.xlu0
        %v674 = vpop.trf.xlu0
        %v675 = vpop.trf.xlu0
        %v676 = vpop.trf.xlu0
        %v677 = vpop.trf.xlu0
        %v678 = vpop.trf.xlu0
        %v679 = vpop.trf.xlu0
        %v680 = vpop.trf.xlu0
        %v681 = vpop.trf.xlu0
        %v682 = vpop.trf.xlu0
        %v683 = vpop.trf.xlu0
        %v684 = vpop.trf.xlu0
        %v685 = vpop.trf.xlu0
        %v686 = vpop.trf.xlu0
        %v687 = vpop.trf.xlu0
        %v689 = vsel %vm348, %v672, 0
        %v692 = vsel %vm348, %v673, 0
        %694 = vmatprep.subr.mxu0 0.0
        %695 = vmatpush1.msra.mxu0 0.0
        %696 = vmatprep.subr.mxu0 0.0
        %697 = vmatpush1.msra.mxu0 0.0
        %698 = vmatprep.subr.mxu0 0.0
        %699 = vmatpush1.msra.mxu0 0.0
        %700 = vmatprep.subr.mxu0 0.0
        %701 = vmatpush1.msra.mxu0 0.0
        %702 = vmatprep.subr.mxu0 0.0
        %703 = vmatpush1.msra.mxu0 0.0
        %704 = vmatprep.subr.mxu0 0.0
        %705 = vmatpush1.msra.mxu0 0.0
        %706 = vmatprep.subr.mxu0 0.0
        %707 = vmatpush1.msra.mxu0 0.0
        %708 = vmatprep.subr.mxu0 0.0
        %709 = vmatpush1.msra.mxu0 0.0
        %710 = vmatprep.subr.mxu0 0.0
        %711 = vmatpush1.msra.mxu0 0.0
        %712 = vmatprep.subr.mxu0 0.0
        %713 = vmatpush1.msra.mxu0 0.0
        %714 = vmatprep.subr.mxu0 0.0
        %715 = vmatpush1.msra.mxu0 0.0
        %716 = vmatprep.subr.mxu0 0.0
        %717 = vmatpush1.msra.mxu0 0.0
        %718 = vmatprep.subr.mxu0 0.0
        %719 = vmatpush1.msra.mxu0 0.0
        %720 = vmatprep.subr.mxu0 0.0
        %721 = vmatpush1.msra.mxu0 0.0
        %722 = vmatprep.subr.mxu0 0.0
        %723 = vmatpush1.msra.mxu0 0.0
        %724 = vmatprep.subr.mxu0 0.0
        %725 = vmatpush1.msra.mxu0 %v311
        %726 = vmatprep.subr.mxu0 0.0
        %727 = vmatpush2.msra.mxu0 0.0
        %728 = vmatprep.subr.mxu0 0.0
        %729 = vmatpush2.msra.mxu0 0.0
        %730 = vmatprep.subr.mxu0 0.0
        %731 = vmatpush2.msra.mxu0 0.0
        %732 = vmatprep.subr.mxu0 0.0
        %733 = vmatpush2.msra.mxu0 0.0
        %734 = vmatprep.subr.mxu0 0.0
        %735 = vmatpush2.msra.mxu0 0.0
        %736 = vmatprep.subr.mxu0 0.0
        %737 = vmatpush2.msra.mxu0 0.0
        %738 = vmatprep.subr.mxu0 0.0
        %739 = vmatpush2.msra.mxu0 0.0
        %740 = vmatprep.subr.mxu0 0.0
        %741 = vmatpush2.msra.mxu0 0.0
        %742 = vmatprep.subr.mxu0 0.0
        %743 = vmatpush2.msra.mxu0 0.0
        %744 = vmatprep.subr.mxu0 0.0
        %745 = vmatpush2.msra.mxu0 0.0
        %746 = vmatprep.subr.mxu0 0.0
        %747 = vmatpush2.msra.mxu0 0.0
        %748 = vmatprep.subr.mxu0 0.0
        %749 = vmatpush2.msra.mxu0 0.0
        %750 = vmatprep.subr.mxu0 0.0
        %751 = vmatpush2.msra.mxu0 0.0
        %752 = vmatprep.subr.mxu0 0.0
        %753 = vmatpush2.msra.mxu0 0.0
        %754 = vmatprep.subr.mxu0 0.0
        %755 = vmatpush2.msra.mxu0 0.0
        %756 = vmatprep.subr.mxu0 0.0
        %757 = vmatpush2.msra.mxu0 0.0
        %758 = vmatprep.mubr.f32.mxu0 0.0
        %759 = vmatmul.mubr.f32.gmra.mxu0 %v689
        %v760 = vpop.f32.mrf.mxu0
        %v761 = vadd.f32 0.0, %v760
        %v762 = vpop.f32.mrf.mxu0
        %763 = vmatprep.mubr.f32.mxu0 0.0
        %764 = vmatmul.mubr.f32.gmra.mxu0 %v692
        %v765 = vpop.f32.mrf.mxu0
        %v766 = vadd.f32 0.0, %v765
        %v767 = vpop.f32.mrf.mxu0
        %768 = vdwg.mxu0
        %v769 = vmul.f32 %v422, 0.35355338
        %v770 = vmul.f32 %v427, 0.35355338
        %v771 = vmul.f32 %v535, 0.35355338
        %v772 = vmul.f32 %v540, 0.35355338
        %v773 = vmul.f32 %v648, 0.35355338
        %v774 = vmul.f32 %v653, 0.35355338
        %v775 = vmul.f32 %v761, 0.35355338
        %v776 = vmul.f32 %v766, 0.35355338
        %vm777 = vcmask 130048
        %v778 = vsel %vm777, %v769, -inf
        %779 = vmax.xlane.f32.xlu0 %v778
        %v780 = vpop.xlane.xlu0 %779
        %v781 = vsel %vm777, %v770, -inf
        %782 = vmax.xlane.f32.xlu0 %v781
        %v783 = vpop.xlane.xlu0 %782
        %v784 = vsel %vm777, %v771, -inf
        %785 = vmax.xlane.f32.xlu0 %v784
        %v786 = vpop.xlane.xlu0 %785
        %v787 = vsel %vm777, %v772, -inf
        %788 = vmax.xlane.f32.xlu0 %v787
        %v789 = vpop.xlane.xlu0 %788
        %v790 = vsel %vm777, %v773, -inf
        %791 = vmax.xlane.f32.xlu0 %v790
        %v792 = vpop.xlane.xlu0 %791
        %v793 = vsel %vm777, %v774, -inf
        %794 = vmax.xlane.f32.xlu0 %v793
        %v795 = vpop.xlane.xlu0 %794
        %v796 = vsel %vm777, %v775, -inf
        %797 = vmax.xlane.f32.xlu0 %v796
        %v798 = vpop.xlane.xlu0 %797
        %v799 = vsel %vm777, %v776, -inf
        %800 = vmax.xlane.f32.xlu0 %v799
        %v801 = vpop.xlane.xlu0 %800
        %v802 = vsub.f32 %v769, %v780
        %v803 = vsub.f32 %v770, %v783
        %v804 = vsub.f32 %v771, %v786
        %v805 = vsub.f32 %v772, %v789
        %v806 = vsub.f32 %v773, %v792
        %v807 = vsub.f32 %v774, %v795
        %v808 = vsub.f32 %v775, %v798
        %v809 = vsub.f32 %v776, %v801
        %v810 = vmul.f32 %v802, 1.442695
        %v811 = vpow.pop %v810
        %v812 = vmul.f32 %v803, 1.442695
        %v813 = vpow.pop %v812
        %v814 = vmul.f32 %v804, 1.442695
        %v815 = vpow.pop %v814
        %v816 = vmul.f32 %v805, 1.442695
        %v817 = vpow.pop %v816
        %v818 = vmul.f32 %v806, 1.442695
        %v819 = vpow.pop %v818
        %v820 = vmul.f32 %v807, 1.442695
        %v821 = vpow.pop %v820
        %v822 = vmul.f32 %v808, 1.442695
        %v823 = vpow.pop %v822
        %v824 = vmul.f32 %v809, 1.442695
        %v825 = vpow.pop %v824
        %v826 = vsel %vm777, %v811, 0.0
        %827 = vadd.xlane.f32.xlu0 %v826
        %v828 = vpop.xlane.xlu0 %827
        %v829 = vsel %vm777, %v813, 0.0
        %830 = vadd.xlane.f32.xlu0 %v829
        %v831 = vpop.xlane.xlu0 %830
        %v832 = vsel %vm777, %v815, 0.0
        %833 = vadd.xlane.f32.xlu0 %v832
        %v834 = vpop.xlane.xlu0 %833
        %v835 = vsel %vm777, %v817, 0.0
        %836 = vadd.xlane.f32.xlu0 %v835
        %v837 = vpop.xlane.xlu0 %836
        %v838 = vsel %vm777, %v819, 0.0
        %839 = vadd.xlane.f32.xlu0 %v838
        %v840 = vpop.xlane.xlu0 %839
        %v841 = vsel %vm777, %v821, 0.0
        %842 = vadd.xlane.f32.xlu0 %v841
        %v843 = vpop.xlane.xlu0 %842
        %v844 = vsel %vm777, %v823, 0.0
        %845 = vadd.xlane.f32.xlu0 %v844
        %v846 = vpop.xlane.xlu0 %845
        %v847 = vsel %vm777, %v825, 0.0
        %848 = vadd.xlane.f32.xlu0 %v847
        %v849 = vpop.xlane.xlu0 %848
        %v850 = vrcp.pop %v828
        %v851 = vrcp.pop %v831
        %v852 = vrcp.pop %v834
        %v853 = vrcp.pop %v837
        %v854 = vrcp.pop %v840
        %v855 = vrcp.pop %v843
        %v856 = vrcp.pop %v846
        %v857 = vrcp.pop %v849
        %v858 = vmul.f32 %v811, %v850
        %v859 = vmul.f32 %v813, %v851
        %v860 = vmul.f32 %v815, %v852
        %v861 = vmul.f32 %v817, %v853
        %v862 = vmul.f32 %v819, %v854
        %v863 = vmul.f32 %v821, %v855
        %v864 = vmul.f32 %v823, %v856
        %v865 = vmul.f32 %v825, %v857
        %v867 = vsel %vm777, %v312, 0
        %v870 = vsel %vm777, %v858, 0
        %v873 = vsel %vm777, %v859, 0
        %875 = vmatprep.subr.mxu0 0.0
        %876 = vmatpush1.xpose.msra.mxu0 0.0
        %877 = vmatprep.subr.mxu0 0.0
        %878 = vmatpush1.xpose.msra.mxu0 0.0
        %879 = vmatprep.subr.mxu0 0.0
        %880 = vmatpush1.xpose.msra.mxu0 0.0
        %881 = vmatprep.subr.mxu0 0.0
        %882 = vmatpush1.xpose.msra.mxu0 0.0
        %883 = vmatprep.subr.mxu0 0.0
        %884 = vmatpush1.xpose.msra.mxu0 0.0
        %885 = vmatprep.subr.mxu0 0.0
        %886 = vmatpush1.xpose.msra.mxu0 0.0
        %887 = vmatprep.subr.mxu0 0.0
        %888 = vmatpush1.xpose.msra.mxu0 0.0
        %889 = vmatprep.subr.mxu0 0.0
        %890 = vmatpush1.xpose.msra.mxu0 0.0
        %891 = vmatprep.subr.mxu0 0.0
        %892 = vmatpush1.xpose.msra.mxu0 0.0
        %893 = vmatprep.subr.mxu0 0.0
        %894 = vmatpush1.xpose.msra.mxu0 0.0
        %895 = vmatprep.subr.mxu0 0.0
        %896 = vmatpush1.xpose.msra.mxu0 0.0
        %897 = vmatprep.subr.mxu0 0.0
        %898 = vmatpush1.xpose.msra.mxu0 0.0
        %899 = vmatprep.subr.mxu0 0.0
        %900 = vmatpush1.xpose.msra.mxu0 0.0
        %901 = vmatprep.subr.mxu0 0.0
        %902 = vmatpush1.xpose.msra.mxu0 0.0
        %903 = vmatprep.subr.mxu0 0.0
        %904 = vmatpush1.xpose.msra.mxu0 %v873
        %905 = vmatprep.subr.mxu0 0.0
        %906 = vmatpush1.xpose.msra.mxu0 %v870
        %907 = vmatprep.subr.mxu0 0.0
        %908 = vmatpush2.xpose.msra.mxu0 0.0
        %909 = vmatprep.subr.mxu0 0.0
        %910 = vmatpush2.xpose.msra.mxu0 0.0
        %911 = vmatprep.subr.mxu0 0.0
        %912 = vmatpush2.xpose.msra.mxu0 0.0
        %913 = vmatprep.subr.mxu0 0.0
        %914 = vmatpush2.xpose.msra.mxu0 0.0
        %915 = vmatprep.subr.mxu0 0.0
        %916 = vmatpush2.xpose.msra.mxu0 0.0
        %917 = vmatprep.subr.mxu0 0.0
        %918 = vmatpush2.xpose.msra.mxu0 0.0
        %919 = vmatprep.subr.mxu0 0.0
        %920 = vmatpush2.xpose.msra.mxu0 0.0
        %921 = vmatprep.subr.mxu0 0.0
        %922 = vmatpush2.xpose.msra.mxu0 0.0
        %923 = vmatprep.subr.mxu0 0.0
        %924 = vmatpush2.xpose.msra.mxu0 0.0
        %925 = vmatprep.subr.mxu0 0.0
        %926 = vmatpush2.xpose.msra.mxu0 0.0
        %927 = vmatprep.subr.mxu0 0.0
        %928 = vmatpush2.xpose.msra.mxu0 0.0
        %929 = vmatprep.subr.mxu0 0.0
        %930 = vmatpush2.xpose.msra.mxu0 0.0
        %931 = vmatprep.subr.mxu0 0.0
        %932 = vmatpush2.xpose.msra.mxu0 0.0
        %933 = vmatprep.subr.mxu0 0.0
        %934 = vmatpush2.xpose.msra.mxu0 0.0
        %935 = vmatprep.subr.mxu0 0.0
        %936 = vmatpush2.xpose.msra.mxu0 0.0
        %937 = vmatprep.subr.mxu0 0.0
        %938 = vmatpush2.xpose.msra.mxu0 0.0
        %939 = vmatprep.mubr.f32.mxu0 0.0
        %940 = vmatmul.mubr.f32.gmra.mxu0 %v867
        %v941 = vpop.f32.mrf.mxu0
        %v942 = vadd.f32 0.0, %v941
        %v943 = vpop.f32.mrf.mxu0
        %944 = vdwg.mxu0
        %v946 = vsel %vm777, %v313, 0
        %v949 = vsel %vm777, %v860, 0
        %v952 = vsel %vm777, %v861, 0
        %954 = vmatprep.subr.mxu0 0.0
        %955 = vmatpush1.xpose.msra.mxu0 0.0
        %956 = vmatprep.subr.mxu0 0.0
        %957 = vmatpush1.xpose.msra.mxu0 0.0
        %958 = vmatprep.subr.mxu0 0.0
        %959 = vmatpush1.xpose.msra.mxu0 0.0
        %960 = vmatprep.subr.mxu0 0.0
        %961 = vmatpush1.xpose.msra.mxu0 0.0
        %962 = vmatprep.subr.mxu0 0.0
        %963 = vmatpush1.xpose.msra.mxu0 0.0
        %964 = vmatprep.subr.mxu0 0.0
        %965 = vmatpush1.xpose.msra.mxu0 0.0
        %966 = vmatprep.subr.mxu0 0.0
        %967 = vmatpush1.xpose.msra.mxu0 0.0
        %968 = vmatprep.subr.mxu0 0.0
        %969 = vmatpush1.xpose.msra.mxu0 0.0
        %970 = vmatprep.subr.mxu0 0.0
        %971 = vmatpush1.xpose.msra.mxu0 0.0
        %972 = vmatprep.subr.mxu0 0.0
        %973 = vmatpush1.xpose.msra.mxu0 0.0
        %974 = vmatprep.subr.mxu0 0.0
        %975 = vmatpush1.xpose.msra.mxu0 0.0
        %976 = vmatprep.subr.mxu0 0.0
        %977 = vmatpush1.xpose.msra.mxu0 0.0
        %978 = vmatprep.subr.mxu0 0.0
        %979 = vmatpush1.xpose.msra.mxu0 0.0
        %980 = vmatprep.subr.mxu0 0.0
        %981 = vmatpush1.xpose.msra.mxu0 0.0
        %982 = vmatprep.subr.mxu0 0.0
        %983 = vmatpush1.xpose.msra.mxu0 %v952
        %984 = vmatprep.subr.mxu0 0.0
        %985 = vmatpush1.xpose.msra.mxu0 %v949
        %986 = vmatprep.subr.mxu0 0.0
        %987 = vmatpush2.xpose.msra.mxu0 0.0
        %988 = vmatprep.subr.mxu0 0.0
        %989 = vmatpush2.xpose.msra.mxu0 0.0
        %990 = vmatprep.subr.mxu0 0.0
        %991 = vmatpush2.xpose.msra.mxu0 0.0
        %992 = vmatprep.subr.mxu0 0.0
        %993 = vmatpush2.xpose.msra.mxu0 0.0
        %994 = vmatprep.subr.mxu0 0.0
        %995 = vmatpush2.xpose.msra.mxu0 0.0
        %996 = vmatprep.subr.mxu0 0.0
        %997 = vmatpush2.xpose.msra.mxu0 0.0
        %998 = vmatprep.subr.mxu0 0.0
        %999 = vmatpush2.xpose.msra.mxu0 0.0
        %1000 = vmatprep.subr.mxu0 0.0
        %1001 = vmatpush2.xpose.msra.mxu0 0.0
        %1002 = vmatprep.subr.mxu0 0.0
        %1003 = vmatpush2.xpose.msra.mxu0 0.0
        %1004 = vmatprep.subr.mxu0 0.0
        %1005 = vmatpush2.xpose.msra.mxu0 0.0
        %1006 = vmatprep.subr.mxu0 0.0
        %1007 = vmatpush2.xpose.msra.mxu0 0.0
        %1008 = vmatprep.subr.mxu0 0.0
        %1009 = vmatpush2.xpose.msra.mxu0 0.0
        %1010 = vmatprep.subr.mxu0 0.0
        %1011 = vmatpush2.xpose.msra.mxu0 0.0
        %1012 = vmatprep.subr.mxu0 0.0
        %1013 = vmatpush2.xpose.msra.mxu0 0.0
        %1014 = vmatprep.subr.mxu0 0.0
        %1015 = vmatpush2.xpose.msra.mxu0 0.0
        %1016 = vmatprep.subr.mxu0 0.0
        %1017 = vmatpush2.xpose.msra.mxu0 0.0
        %1018 = vmatprep.mubr.f32.mxu0 0.0
        %1019 = vmatmul.mubr.f32.gmra.mxu0 %v946
        %v1020 = vpop.f32.mrf.mxu0
        %v1021 = vadd.f32 0.0, %v1020
        %v1022 = vpop.f32.mrf.mxu0
        %1023 = vdwg.mxu0
        %v1025 = vsel %vm777, %v314, 0
        %v1028 = vsel %vm777, %v862, 0
        %v1031 = vsel %vm777, %v863, 0
        %1033 = vmatprep.subr.mxu0 0.0
        %1034 = vmatpush1.xpose.msra.mxu0 0.0
        %1035 = vmatprep.subr.mxu0 0.0
        %1036 = vmatpush1.xpose.msra.mxu0 0.0
        %1037 = vmatprep.subr.mxu0 0.0
        %1038 = vmatpush1.xpose.msra.mxu0 0.0
        %1039 = vmatprep.subr.mxu0 0.0
        %1040 = vmatpush1.xpose.msra.mxu0 0.0
        %1041 = vmatprep.subr.mxu0 0.0
        %1042 = vmatpush1.xpose.msra.mxu0 0.0
        %1043 = vmatprep.subr.mxu0 0.0
        %1044 = vmatpush1.xpose.msra.mxu0 0.0
        %1045 = vmatprep.subr.mxu0 0.0
        %1046 = vmatpush1.xpose.msra.mxu0 0.0
        %1047 = vmatprep.subr.mxu0 0.0
        %1048 = vmatpush1.xpose.msra.mxu0 0.0
        %1049 = vmatprep.subr.mxu0 0.0
        %1050 = vmatpush1.xpose.msra.mxu0 0.0
        %1051 = vmatprep.subr.mxu0 0.0
        %1052 = vmatpush1.xpose.msra.mxu0 0.0
        %1053 = vmatprep.subr.mxu0 0.0
        %1054 = vmatpush1.xpose.msra.mxu0 0.0
        %1055 = vmatprep.subr.mxu0 0.0
        %1056 = vmatpush1.xpose.msra.mxu0 0.0
        %1057 = vmatprep.subr.mxu0 0.0
        %1058 = vmatpush1.xpose.msra.mxu0 0.0
        %1059 = vmatprep.subr.mxu0 0.0
        %1060 = vmatpush1.xpose.msra.mxu0 0.0
        %1061 = vmatprep.subr.mxu0 0.0
        %1062 = vmatpush1.xpose.msra.mxu0 %v1031
        %1063 = vmatprep.subr.mxu0 0.0
        %1064 = vmatpush1.xpose.msra.mxu0 %v1028
        %1065 = vmatprep.subr.mxu0 0.0
        %1066 = vmatpush2.xpose.msra.mxu0 0.0
        %1067 = vmatprep.subr.mxu0 0.0
        %1068 = vmatpush2.xpose.msra.mxu0 0.0
        %1069 = vmatprep.subr.mxu0 0.0
        %1070 = vmatpush2.xpose.msra.mxu0 0.0
        %1071 = vmatprep.subr.mxu0 0.0
        %1072 = vmatpush2.xpose.msra.mxu0 0.0
        %1073 = vmatprep.subr.mxu0 0.0
        %1074 = vmatpush2.xpose.msra.mxu0 0.0
        %1075 = vmatprep.subr.mxu0 0.0
        %1076 = vmatpush2.xpose.msra.mxu0 0.0
        %1077 = vmatprep.subr.mxu0 0.0
        %1078 = vmatpush2.xpose.msra.mxu0 0.0
        %1079 = vmatprep.subr.mxu0 0.0
        %1080 = vmatpush2.xpose.msra.mxu0 0.0
        %1081 = vmatprep.subr.mxu0 0.0
        %1082 = vmatpush2.xpose.msra.mxu0 0.0
        %1083 = vmatprep.subr.mxu0 0.0
        %1084 = vmatpush2.xpose.msra.mxu0 0.0
        %1085 = vmatprep.subr.mxu0 0.0
        %1086 = vmatpush2.xpose.msra.mxu0 0.0
        %1087 = vmatprep.subr.mxu0 0.0
        %1088 = vmatpush2.xpose.msra.mxu0 0.0
        %1089 = vmatprep.subr.mxu0 0.0
        %1090 = vmatpush2.xpose.msra.mxu0 0.0
        %1091 = vmatprep.subr.mxu0 0.0
        %1092 = vmatpush2.xpose.msra.mxu0 0.0
        %1093 = vmatprep.subr.mxu0 0.0
        %1094 = vmatpush2.xpose.msra.mxu0 0.0
        %1095 = vmatprep.subr.mxu0 0.0
        %1096 = vmatpush2.xpose.msra.mxu0 0.0
        %1097 = vmatprep.mubr.f32.mxu0 0.0
        %1098 = vmatmul.mubr.f32.gmra.mxu0 %v1025
        %v1099 = vpop.f32.mrf.mxu0
        %v1100 = vadd.f32 0.0, %v1099
        %v1101 = vpop.f32.mrf.mxu0
        %1102 = vdwg.mxu0
        %v1104 = vsel %vm777, %v315, 0
        %v1107 = vsel %vm777, %v864, 0
        %v1110 = vsel %vm777, %v865, 0
        %1112 = vmatprep.subr.mxu0 0.0
        %1113 = vmatpush1.xpose.msra.mxu0 0.0
        %1114 = vmatprep.subr.mxu0 0.0
        %1115 = vmatpush1.xpose.msra.mxu0 0.0
        %1116 = vmatprep.subr.mxu0 0.0
        %1117 = vmatpush1.xpose.msra.mxu0 0.0
        %1118 = vmatprep.subr.mxu0 0.0
        %1119 = vmatpush1.xpose.msra.mxu0 0.0
        %1120 = vmatprep.subr.mxu0 0.0
        %1121 = vmatpush1.xpose.msra.mxu0 0.0
        %1122 = vmatprep.subr.mxu0 0.0
        %1123 = vmatpush1.xpose.msra.mxu0 0.0
        %1124 = vmatprep.subr.mxu0 0.0
        %1125 = vmatpush1.xpose.msra.mxu0 0.0
        %1126 = vmatprep.subr.mxu0 0.0
        %1127 = vmatpush1.xpose.msra.mxu0 0.0
        %1128 = vmatprep.subr.mxu0 0.0
        %1129 = vmatpush1.xpose.msra.mxu0 0.0
        %1130 = vmatprep.subr.mxu0 0.0
        %1131 = vmatpush1.xpose.msra.mxu0 0.0
        %1132 = vmatprep.subr.mxu0 0.0
        %1133 = vmatpush1.xpose.msra.mxu0 0.0
        %1134 = vmatprep.subr.mxu0 0.0
        %1135 = vmatpush1.xpose.msra.mxu0 0.0
        %1136 = vmatprep.subr.mxu0 0.0
        %1137 = vmatpush1.xpose.msra.mxu0 0.0
        %1138 = vmatprep.subr.mxu0 0.0
        %1139 = vmatpush1.xpose.msra.mxu0 0.0
        %1140 = vmatprep.subr.mxu0 0.0
        %1141 = vmatpush1.xpose.msra.mxu0 %v1110
        %1142 = vmatprep.subr.mxu0 0.0
        %1143 = vmatpush1.xpose.msra.mxu0 %v1107
        %1144 = vmatprep.subr.mxu0 0.0
        %1145 = vmatpush2.xpose.msra.mxu0 0.0
        %1146 = vmatprep.subr.mxu0 0.0
        %1147 = vmatpush2.xpose.msra.mxu0 0.0
        %1148 = vmatprep.subr.mxu0 0.0
        %1149 = vmatpush2.xpose.msra.mxu0 0.0
        %1150 = vmatprep.subr.mxu0 0.0
        %1151 = vmatpush2.xpose.msra.mxu0 0.0
        %1152 = vmatprep.subr.mxu0 0.0
        %1153 = vmatpush2.xpose.msra.mxu0 0.0
        %1154 = vmatprep.subr.mxu0 0.0
        %1155 = vmatpush2.xpose.msra.mxu0 0.0
        %1156 = vmatprep.subr.mxu0 0.0
        %1157 = vmatpush2.xpose.msra.mxu0 0.0
        %1158 = vmatprep.subr.mxu0 0.0
        %1159 = vmatpush2.xpose.msra.mxu0 0.0
        %1160 = vmatprep.subr.mxu0 0.0
        %1161 = vmatpush2.xpose.msra.mxu0 0.0
        %1162 = vmatprep.subr.mxu0 0.0
        %1163 = vmatpush2.xpose.msra.mxu0 0.0
        %1164 = vmatprep.subr.mxu0 0.0
        %1165 = vmatpush2.xpose.msra.mxu0 0.0
        %1166 = vmatprep.subr.mxu0 0.0
        %1167 = vmatpush2.xpose.msra.mxu0 0.0
        %1168 = vmatprep.subr.mxu0 0.0
        %1169 = vmatpush2.xpose.msra.mxu0 0.0
        %1170 = vmatprep.subr.mxu0 0.0
        %1171 = vmatpush2.xpose.msra.mxu0 0.0
        %1172 = vmatprep.subr.mxu0 0.0
        %1173 = vmatpush2.xpose.msra.mxu0 0.0
        %1174 = vmatprep.subr.mxu0 0.0
        %1175 = vmatpush2.xpose.msra.mxu0 0.0
        %1176 = vmatprep.mubr.f32.mxu0 0.0
        %1177 = vmatmul.mubr.f32.gmra.mxu0 %v1104
        %v1178 = vpop.f32.mrf.mxu0
        %v1179 = vadd.f32 0.0, %v1178
        %v1180 = vpop.f32.mrf.mxu0
        %1181 = vdwg.mxu0
        %1182 = vst.msk [vmem:[%s297] sm:$0xff] %vm777, %v942
        %1183 = vst.msk [vmem:[%s297 + $0x8] sm:$0xff] %vm777, %v1021
        %1184 = vst.msk [vmem:[%s297 + $0x10] sm:$0xff] %vm777, %v1100
        %1185 = vst.msk [vmem:[%s297 + $0x18] sm:$0xff] %vm777, %v1179
        %s1186 = sand.u32 %s133, 1
        %s1187 = scalar_lea.sflag [#allocation4], %s1186
        %s1188 = sand.u32 %s133, 1
        %s1189 = smul.addr %s1188, 32
        %s1190 = scalar_lea.vmem [#allocation8], %s1189
        // Predicated region
        $region45: #{tpu_custom_call.1} parent=31 // pred_check
          %p1191 = pneg %p143
        $region46: #{tpu_custom_call.1} parent=31 // pred_check_branch
          %1193 = sbr.rel (%p1191) target = $region48
        $region47: #{tpu_custom_call.1} parent=31 // pred_region
          %s1194 = smul.u32 4, %s28
          %s1196 = ssub.s32 512, 512
          %1197 = vsyncadd %s1187, %s1196
          %s1198 = smul.addr %s27, 4
          %s1199 = sadd.s32 %s1194, %s1198
          %s1200 = smul.addr %s1199, 128
          %s1201 = scalar_lea.hbm %s3, %s1200
          %s1202 = sshll.u32 %s1190, 4
          %s1203 = int_to_ptr.vmem [resolvable:$true] %s1202
          %1208 = dma.vmem_to_hbm [thread:$0]  %s1203, 512, %s1201, %s1187, 128, 128, 8
        $region48: #{tpu_custom_call.1} parent=31 // pred_fallthru
          _
      $region32: #{tpu_custom_call.1} parent=5 // pred_fallthru
        _
      %p1209 = scmp.le.s32.totalorder 2, %s18
      // Predicated region
      $region49: #{tpu_custom_call.1} parent=5 // pred_check
        %p1210 = pneg %p1209
      $region50: #{tpu_custom_call.1} parent=5 // pred_check_branch
        %1212 = sbr.rel (%p1210) target = $region52
      $region51: #{tpu_custom_call.1} parent=5 // pred_region
        %s1213 = ssub.s32 %s18, 2
        // Predicated region
        $region53: #{tpu_custom_call.1} parent=51 // pred_check
          %p1214 = pneg %p149
        $region54: #{tpu_custom_call.1} parent=51 // pred_check_branch
          %1216 = sbr.rel (%p1214) target = $region56
        $region55: #{tpu_custom_call.1} parent=51 // pred_region
          %s1217 = sand.u32 %s134, 1
          %s1218 = scalar_lea.sflag [#allocation4], %s1217
          %s1219 = sand.u32 %s134, 1
          %s1220 = smul.addr %s1219, 32
          %s1221 = scalar_lea.vmem [#allocation8], %s1220
          %1222 = dma.done %s1218, 512
        $region56: #{tpu_custom_call.1} parent=51 // pred_fallthru
          _
      $region52: #{tpu_custom_call.1} parent=5 // pred_fallthru
        _
    $region6: #{tpu_custom_call.1} parent=1 // loop_footer
      %s22 = sadd.s32 1, %s18
    $region7: #{tpu_custom_call.1} parent=1 // loop_footer_branch
      %17 = sbr.rel target = $region3
    $region8: #{tpu_custom_call.1} parent=1 // loop_exit
      _
    %1223 = vsyncpa [#allocation3], 1
    %s1224 = scalar_lea.sflag [#allocation3], 1
    %1225 = vsyncpa %s1224, 1
    %1226 = vsyncpa [#allocation6], 1
    %s1227 = scalar_lea.sflag [#allocation6], 1
    %1228 = vsyncpa %s1227, 1
    %1229 = vsyncpa [#allocation4], 1
    %s1230 = scalar_lea.sflag [#allocation4], 1
    %1231 = vsyncpa %s1230, 1

</llo_original>
